<compile_context>
chip_gen: v5e
topology: v5e:2x2
jax: 0.10.0
libtpu: 0.0.40
codegen_flags: <defaults>
</compile_context>

<pallas_src>
import jax
import jax.numpy as jnp
from jax.experimental import pallas as pl
from jax.experimental.pallas import tpu as pltpu

NUM_CLASSES = 9
INPUT_SIZE = 384        # sentence-transformer embedding dim (multiple of 128)
HIDDEN1 = 128
HIDDEN2 = 64

# padded (lane-dense) dims used inside the kernel
H2_PAD = 128
C_PAD = 128

MAX_TILE_B = 512        # batch rows per grid step (review: 512-1024 amortizes
                        # the ~0.35us per-step overhead; VMEM use ~3 MiB)


def mlp_softmax_kernel(x_ref, w1_ref, b1_ref, w2_ref, b2_ref, w3_ref, b3_ref, o_ref):
    # fc1 + ReLU   (bf16 operands into the MXU, f32 accumulate)
    x = x_ref[...].astype(jnp.bfloat16)
    h1 = jnp.dot(x, w1_ref[...], preferred_element_type=jnp.float32) + b1_ref[...]
    h1 = jnp.maximum(h1, 0.0).astype(jnp.bfloat16)

    # fc2 + ReLU   (output padded to 128 lanes; padded cols are exactly 0)
    h2 = jnp.dot(h1, w2_ref[...], preferred_element_type=jnp.float32) + b2_ref[...]
    h2 = jnp.maximum(h2, 0.0).astype(jnp.bfloat16)

    # fc3          (class dim padded to 128; padded logits = -1e30 via bias)
    logits = jnp.dot(h2, w3_ref[...], preferred_element_type=jnp.float32) + b3_ref[...]

    # numerically stable softmax over the (padded) class axis.
    m = jnp.max(logits, axis=-1, keepdims=True)
    e = jnp.exp(logits - m)                       # padded cols -> exp(-huge) = 0
    denom = jnp.sum(e, axis=-1, keepdims=True)
    # exact divide: rows sum to 1 within f32 rounding (approx reciprocal does not)
    o_ref[...] = (e / denom).astype(o_ref.dtype)


def _pick_tile_b(batch):
    """Batch tile: big enough to amortize per-step overhead, but keep grid >= 2
    when possible so both v7x TensorCores get work; always a multiple of 8
    (or the full batch when batch <= 8)."""
    if batch <= 8:
        return batch
    if batch >= 2 * MAX_TILE_B:
        return MAX_TILE_B
    half = (batch + 1) // 2
    return min(MAX_TILE_B, ((half + 7) // 8) * 8)


def classification_model_forward(x, padded_params):
    """x: (B, INPUT_SIZE) f32 (or bf16).  padded_params: output of prepare_params()."""
    w1, b1, w2, b2, w3, b3 = padded_params
    B = x.shape[0]

    tile_b = _pick_tile_b(B)
    grid = (pl.cdiv(B, tile_b),)   # no wrapper pad: last block may be partial
                                   # (per-row ops => garbage tail rows are
                                   #  dropped on the masked OOB write)

    const = lambda a: pl.BlockSpec(a.shape, lambda i: (0, 0))   # stays resident

    out = pl.pallas_call(
        mlp_softmax_kernel,
        out_shape=jax.ShapeDtypeStruct((B, C_PAD), jnp.float32),
        grid=grid,
        in_specs=[
            pl.BlockSpec((tile_b, INPUT_SIZE), lambda i: (i, 0)),   # x tile
            const(w1), const(b1),
            const(w2), const(b2),
            const(w3), const(b3),
        ],
        out_specs=pl.BlockSpec((tile_b, C_PAD), lambda i: (i, 0)),
        compiler_params=pltpu.CompilerParams(
            dimension_semantics=("parallel",),
            vmem_limit_bytes=32 * 1024 * 1024,   # headroom for large tiles on v5e
        ),
    )(x, w1, b1, w2, b2, w3, b3)

    return out[:, :NUM_CLASSES]


def init_params(key, input_size, num_classes):
    """PyTorch-style uniform(-1/sqrt(fan_in), 1/sqrt(fan_in)) init, f32,
    stored pre-transposed as (fan_in, fan_out) so the kernel does x @ W."""
    keys = jax.random.split(key, 6)

    def lin(kw, kb, fan_in, fan_out):
        bound = 1.0 / jnp.sqrt(fan_in)
        w = jax.random.uniform(kw, (fan_in, fan_out), jnp.float32, -bound, bound)
        b = jax.random.uniform(kb, (1, fan_out), jnp.float32, -bound, bound)
        return w, b

    w1, b1 = lin(keys[0], keys[1], input_size, HIDDEN1)
    w2, b2 = lin(keys[2], keys[3], HIDDEN1, HIDDEN2)
    w3, b3 = lin(keys[4], keys[5], HIDDEN2, num_classes)
    return w1, b1, w2, b2, w3, b3


def prepare_params(params):
    """Pad to lane-dense shapes and cast weights to bf16 (biases stay f32)."""
    w1, b1, w2, b2, w3, b3 = params

    # fc2: pad output dim 64 -> 128 with zero columns (zero bias -> relu(0)=0)
    w2p = jnp.pad(w2, ((0, 0), (0, H2_PAD - HIDDEN2)))
    b2p = jnp.pad(b2, ((0, 0), (0, H2_PAD - HIDDEN2)))

    # fc3: pad input dim 64 -> 128 with zero rows (padded h2 cols are 0 anyway),
    #      pad class dim 9 -> 128 with zero weight cols and -1e30 bias so the
    #      padded logits vanish under softmax.
    w3p = jnp.pad(w3, ((0, H2_PAD - HIDDEN2), (0, C_PAD - NUM_CLASSES)))
    b3p = jnp.pad(b3, ((0, 0), (0, C_PAD - NUM_CLASSES)),
                  constant_values=-1e30)

    return (w1.astype(jnp.bfloat16), b1,
            w2p.astype(jnp.bfloat16), b2p,
            w3p.astype(jnp.bfloat16), b3p)


def reference_forward(x, padded_params):
    """Pure-JAX reference with the same bf16/padding treatment."""
    w1, b1, w2, b2, w3, b3 = padded_params
    h1 = jnp.maximum(jnp.dot(x.astype(jnp.bfloat16), w1,
                             preferred_element_type=jnp.float32) + b1, 0.0)
    h2 = jnp.maximum(jnp.dot(h1.astype(jnp.bfloat16), w2,
                             preferred_element_type=jnp.float32) + b2, 0.0)
    logits = jnp.dot(h2.astype(jnp.bfloat16), w3,
                     preferred_element_type=jnp.float32) + b3
    p = jax.nn.softmax(logits, axis=-1)
    return p[:, :NUM_CLASSES]


if __name__ == "__main__":
    key = jax.random.PRNGKey(0)
    k_x, k_p = jax.random.split(key)

    # 20 rows -> tile_b=16, grid=(2,), last block partial: exercises the
    # multi-step pipelined batch grid AND the no-pad partial-block path.
    batch = 20
    x = jax.random.normal(k_x, (batch, INPUT_SIZE), jnp.float32)

    params = init_params(k_p, INPUT_SIZE, NUM_CLASSES)
    padded_params = prepare_params(params)

    out = jax.block_until_ready(classification_model_forward(x, padded_params))

    assert out.shape == (batch, NUM_CLASSES)
    assert bool(jnp.all(jnp.isfinite(out))), "non-finite probabilities"
    # softmax rows sum to 1 (exact divide; padded classes contribute exp(-1e30)=0)
    assert jnp.allclose(jnp.sum(out, axis=1), 1.0, atol=1e-4), "rows don't sum to 1"
    # matches the pure-JAX reference (same bf16 weights / padding)
    ref = reference_forward(x, padded_params)
    assert jnp.allclose(out, ref, atol=1e-2), "mismatch vs reference"

    print("KERNEL_OK")
</pallas_src>

<mosaic_0001>
module attributes {stable_mosaic.version = 11 : i64} {
  func.func @mlp_softmax_kernel(%arg0: i32, %arg1: memref<16x384xf32, #tpu.memory_space<vmem>>, %arg2: memref<384x128xbf16, #tpu.memory_space<vmem>>, %arg3: memref<1x128xf32, #tpu.memory_space<vmem>>, %arg4: memref<128x128xbf16, #tpu.memory_space<vmem>>, %arg5: memref<1x128xf32, #tpu.memory_space<vmem>>, %arg6: memref<128x128xbf16, #tpu.memory_space<vmem>>, %arg7: memref<1x128xf32, #tpu.memory_space<vmem>>, %arg8: memref<16x128xf32, #tpu.memory_space<vmem>>) attributes {dimension_semantics = [#tpu.dimension_semantics<parallel>], iteration_bounds = array<i64: 2>, scalar_prefetch = 0 : i64, scratch_operands = 0 : i64, tpu.core_type = #tpu.core_type<tc>, window_params = [{transform_indices = @transform_0, window_bounds = array<i64: 16, 384>}, {pipeline_mode = #tpu.pipeline_mode<synchronous>, transform_indices = @transform_1, window_bounds = array<i64: 384, 128>}, {pipeline_mode = #tpu.pipeline_mode<synchronous>, transform_indices = @transform_2, window_bounds = array<i64: 1, 128>}, {pipeline_mode = #tpu.pipeline_mode<synchronous>, transform_indices = @transform_3, window_bounds = array<i64: 128, 128>}, {pipeline_mode = #tpu.pipeline_mode<synchronous>, transform_indices = @transform_4, window_bounds = array<i64: 1, 128>}, {pipeline_mode = #tpu.pipeline_mode<synchronous>, transform_indices = @transform_5, window_bounds = array<i64: 128, 128>}, {pipeline_mode = #tpu.pipeline_mode<synchronous>, transform_indices = @transform_6, window_bounds = array<i64: 1, 128>}, {transform_indices = @transform_7, window_bounds = array<i64: 16, 128>}]} {
    %c0 = arith.constant 0 : index
    %c0_0 = arith.constant 0 : index
    %0 = vector.load %arg1[%c0, %c0_0] : memref<16x384xf32, #tpu.memory_space<vmem>>, vector<16x384xf32>
    %1 = arith.truncf %0 : vector<16x384xf32> to vector<16x384xbf16>
    %c0_1 = arith.constant 0 : index
    %c0_2 = arith.constant 0 : index
    %2 = vector.load %arg2[%c0_1, %c0_2] : memref<384x128xbf16, #tpu.memory_space<vmem>>, vector<384x128xbf16>
    %cst = arith.constant dense<0.000000e+00> : vector<16x128xf32>
    %3 = tpu.matmul %1, %2, %cst {dimension_numbers = #tpu.dot_dimension_numbers<[1], [0], [0], [1], [0, 0, 1, 1], [], []>} : vector<16x384xbf16>, vector<384x128xbf16>, vector<16x128xf32> -> vector<16x128xf32>
    %c0_3 = arith.constant 0 : index
    %c0_4 = arith.constant 0 : index
    %4 = vector.load %arg3[%c0_3, %c0_4] : memref<1x128xf32, #tpu.memory_space<vmem>>, vector<1x128xf32>
    %5 = vector.broadcast %4 : vector<1x128xf32> to vector<16x128xf32>
    %6 = arith.addf %3, %5 : vector<16x128xf32>
    %cst_5 = arith.constant 0.000000e+00 : f32
    %7 = vector.broadcast %cst_5 : f32 to vector<16x128xf32>
    %8 = arith.maximumf %6, %7 : vector<16x128xf32>
    %9 = arith.truncf %8 : vector<16x128xf32> to vector<16x128xbf16>
    %c0_6 = arith.constant 0 : index
    %c0_7 = arith.constant 0 : index
    %10 = vector.load %arg4[%c0_6, %c0_7] : memref<128x128xbf16, #tpu.memory_space<vmem>>, vector<128x128xbf16>
    %cst_8 = arith.constant dense<0.000000e+00> : vector<16x128xf32>
    %11 = tpu.matmul %9, %10, %cst_8 {dimension_numbers = #tpu.dot_dimension_numbers<[1], [0], [0], [1], [0, 0, 1, 1], [], []>} : vector<16x128xbf16>, vector<128x128xbf16>, vector<16x128xf32> -> vector<16x128xf32>
    %c0_9 = arith.constant 0 : index
    %c0_10 = arith.constant 0 : index
    %12 = vector.load %arg5[%c0_9, %c0_10] : memref<1x128xf32, #tpu.memory_space<vmem>>, vector<1x128xf32>
    %13 = vector.broadcast %12 : vector<1x128xf32> to vector<16x128xf32>
    %14 = arith.addf %11, %13 : vector<16x128xf32>
    %cst_11 = arith.constant 0.000000e+00 : f32
    %15 = vector.broadcast %cst_11 : f32 to vector<16x128xf32>
    %16 = arith.maximumf %14, %15 : vector<16x128xf32>
    %17 = arith.truncf %16 : vector<16x128xf32> to vector<16x128xbf16>
    %c0_12 = arith.constant 0 : index
    %c0_13 = arith.constant 0 : index
    %18 = vector.load %arg6[%c0_12, %c0_13] : memref<128x128xbf16, #tpu.memory_space<vmem>>, vector<128x128xbf16>
    %cst_14 = arith.constant dense<0.000000e+00> : vector<16x128xf32>
    %19 = tpu.matmul %17, %18, %cst_14 {dimension_numbers = #tpu.dot_dimension_numbers<[1], [0], [0], [1], [0, 0, 1, 1], [], []>} : vector<16x128xbf16>, vector<128x128xbf16>, vector<16x128xf32> -> vector<16x128xf32>
    %c0_15 = arith.constant 0 : index
    %c0_16 = arith.constant 0 : index
    %20 = vector.load %arg7[%c0_15, %c0_16] : memref<1x128xf32, #tpu.memory_space<vmem>>, vector<1x128xf32>
    %21 = vector.broadcast %20 : vector<1x128xf32> to vector<16x128xf32>
    %22 = arith.addf %19, %21 : vector<16x128xf32>
    %cst_17 = arith.constant dense<0xFF800000> : vector<16xf32>
    %23 = vector.multi_reduction <maximumf>, %22, %cst_17 [1] : vector<16x128xf32> to vector<16xf32>
    %24 = vector.shape_cast %23 : vector<16xf32> to vector<16x1xf32>
    %25 = vector.broadcast %24 : vector<16x1xf32> to vector<16x128xf32>
    %26 = arith.subf %22, %25 : vector<16x128xf32>
    %27 = math.exp %26 : vector<16x128xf32>
    %cst_18 = arith.constant dense<0.000000e+00> : vector<16xf32>
    %28 = vector.multi_reduction <add>, %27, %cst_18 [1] : vector<16x128xf32> to vector<16xf32>
    %29 = vector.shape_cast %28 : vector<16xf32> to vector<16x1xf32>
    %30 = vector.broadcast %29 : vector<16x1xf32> to vector<16x128xf32>
    %31 = arith.divf %27, %30 : vector<16x128xf32>
    %c0_19 = arith.constant 0 : index
    %c0_20 = arith.constant 0 : index
    %32 = vector.load %arg8[%c0_19, %c0_20] : memref<16x128xf32, #tpu.memory_space<vmem>>, vector<16x128xf32>
    tpu.vector_store %arg8[%c0_19, %c0_20], %31 {strides = array<i32>} : memref<16x128xf32, #tpu.memory_space<vmem>>, vector<16x128xf32>,
    return
  }
  func.func @transform_0(%arg0: i32) -> (i32, i32) {
    %c0_i32 = arith.constant 0 : i32
    %c0_i32_0 = arith.constant 0 : i32
    return %arg0, %c0_i32 : i32, i32
  }
  func.func @transform_1(%arg0: i32) -> (i32, i32) {
    %c0_i32 = arith.constant 0 : i32
    %c0_i32_0 = arith.constant 0 : i32
    %c0_i32_1 = arith.constant 0 : i32
    return %c0_i32, %c0_i32_0 : i32, i32
  }
  func.func @transform_2(%arg0: i32) -> (i32, i32) {
    %c0_i32 = arith.constant 0 : i32
    %c0_i32_0 = arith.constant 0 : i32
    %c0_i32_1 = arith.constant 0 : i32
    return %c0_i32, %c0_i32_0 : i32, i32
  }
  func.func @transform_3(%arg0: i32) -> (i32, i32) {
    %c0_i32 = arith.constant 0 : i32
    %c0_i32_0 = arith.constant 0 : i32
    %c0_i32_1 = arith.constant 0 : i32
    return %c0_i32, %c0_i32_0 : i32, i32
  }
  func.func @transform_4(%arg0: i32) -> (i32, i32) {
    %c0_i32 = arith.constant 0 : i32
    %c0_i32_0 = arith.constant 0 : i32
    %c0_i32_1 = arith.constant 0 : i32
    return %c0_i32, %c0_i32_0 : i32, i32
  }
  func.func @transform_5(%arg0: i32) -> (i32, i32) {
    %c0_i32 = arith.constant 0 : i32
    %c0_i32_0 = arith.constant 0 : i32
    %c0_i32_1 = arith.constant 0 : i32
    return %c0_i32, %c0_i32_0 : i32, i32
  }
  func.func @transform_6(%arg0: i32) -> (i32, i32) {
    %c0_i32 = arith.constant 0 : i32
    %c0_i32_0 = arith.constant 0 : i32
    %c0_i32_1 = arith.constant 0 : i32
    return %c0_i32, %c0_i32_0 : i32, i32
  }
  func.func @transform_7(%arg0: i32) -> (i32, i32) {
    %c0_i32 = arith.constant 0 : i32
    %c0_i32_0 = arith.constant 0 : i32
    return %arg0, %c0_i32 : i32, i32
  }
}

</mosaic_0001>

<llo_original>
// kernel: tpu_custom_call.1
$region0: #{tpu_custom_call.1}
  #allocation0 [shape = 'u32[]', space=smem, size = 0x4, offset = 0x4, fixed_abs, tag = 'smem constant byte address 0x4 - core index']
  #allocation1 [shape = 'u32[72,128]{1,0:T(1,128)}', space=vmem, size = 0x9000, scoped, tag = 'internal scratch']
  %s0 = inlined_call_operand.hbm [shape: f32[20,384], index: 0, kind: input, shape index: {}]
  %s1 = inlined_call_operand.hbm [shape: bf16[384,128], index: 1, kind: input, shape index: {}]
  %s2 = inlined_call_operand.vmem [shape: f32[1,128], index: 2, kind: input, shape index: {}]
  %s3 = inlined_call_operand.hbm [shape: bf16[128,128], index: 3, kind: input, shape index: {}]
  %s4 = inlined_call_operand.vmem [shape: f32[1,128], index: 4, kind: input, shape index: {}]
  %s5 = inlined_call_operand.hbm [shape: bf16[128,128], index: 5, kind: input, shape index: {}]
  %s6 = inlined_call_operand.vmem [shape: f32[1,128], index: 6, kind: input, shape index: {}]
  %s7 = inlined_call_operand.hbm [shape: f32[20,128], index: 7, kind: output, shape index: {}]
  %s8 = sld [smem:[#allocation0]]
  $region77: #{tpu_custom_call.1} parent=0
    _
  %s10 = ssub.s32 1, %s8
  %s11 = scalar_select 0, %s10, %s8
  $region1: #{tpu_custom_call.1} parent=0
    #allocation2 [shape = 'u8[49152]{0}', space=vmem, size = 0xc000, scoped, tag = 'input window, operand 0']
    #allocation3 [shape = 's32[2]{0}', space=sflag, size = 0x8, scoped, tag = 'scoped memory for tpu_custom_call.1']
    #allocation4 [shape = 's32[2]{0}', space=sflag, size = 0x8, scoped, tag = 'scoped memory for tpu_custom_call.1']
    #allocation5 [shape = 'u8[98304]{0}', space=vmem, size = 0x18000, scoped, tag = 'input window, operand 1, single buffered']
    #allocation6 [shape = 's32[1]{0}', space=sflag, size = 0x4, scoped, tag = 'scoped memory for tpu_custom_call.1']
    #allocation7 [shape = 'u8[32768]{0}', space=vmem, size = 0x8000, scoped, tag = 'input window, operand 3, single buffered']
    #allocation8 [shape = 'u8[32768]{0}', space=vmem, size = 0x8000, scoped, tag = 'input window, operand 5, single buffered']
    #allocation9 [shape = 's32[1]{0}', space=sflag, size = 0x4, scoped, tag = 'scoped memory for tpu_custom_call.1']
    #allocation10 [shape = 'u8[16384]{0}', space=vmem, size = 0x4000, scoped, tag = 'output window, operand 0']
    %12 = vsyncpa [#allocation3], 0
    %s13 = scalar_lea.sflag [#allocation3], 1
    %14 = vsyncpa %s13, 0
    %15 = vsyncpa [#allocation6], 0
    %16 = vsyncpa [#allocation9], 0
    %17 = vsyncpa [#allocation4], 0
    %s18 = scalar_lea.sflag [#allocation4], 1
    %19 = vsyncpa %s18, 0
    loop: start=0, step=1, limit=4
    $region2: #{tpu_custom_call.1} parent=1 // loop_pre_header
      _
    $region3: #{tpu_custom_call.1} parent=1 // loop_header
      %s21 = sphi 0, %s25
      %p22 = scmp.ge.s32.totalorder %s21, 4
      %s31 = sphi 0, %s33
      %s34 = sphi 0, %s31
      %s35 = sphi 0, %s34
      %s51 = sphi 0, %s35
      %s55 = sphi 0, %s55
      %s57 = sphi 0, %s55
      %s58 = sphi 0, %s57
      %s72 = sphi 0, %s58
      %s76 = sphi 0, %s76
      %s78 = sphi 0, %s76
      %s79 = sphi 0, %s78
      %s93 = sphi 0, %s79
      %s97 = sphi 0, %s97
      %s99 = sphi 0, %s97
      %s100 = sphi 0, %s99
      %s114 = sphi 0, %s100
      %s118 = sphi 0, %s118
      %s120 = sphi 0, %s118
      %s121 = sphi 0, %s120
      %s135 = sphi 0, %s121
      %s139 = sphi 0, %s139
      %s141 = sphi 0, %s139
      %s142 = sphi 0, %s141
      %s156 = sphi 0, %s142
      %s160 = sphi 0, %s160
      %s162 = sphi 0, %s160
      %s163 = sphi 0, %s162
      %s177 = sphi 0, %s163
      %s183 = sphi 0, %s185
      %s186 = sphi 0, %s183
      %s187 = sphi 0, %s186
      %s203 = sphi 0, %s187
    $region4: #{tpu_custom_call.1} parent=1 // loop_header_branch
      %24 = sbr.rel (%p22) target = $region8
    $region5: #{tpu_custom_call.1} parent=1 // loop_body
      %s26 = ssub.s32 %s21, 1
      %s27 = ssub.s32 %s21, 2
      %s28 = sadd.s32 %s21, 1
      %s29 = ssub.s32 %s21, %s28
      %p30 = scmp.eq.s32.totalorder %s29, 0
      %s32 = sadd.s32 %s31, 1
      %s33 = scalar_select %p30, %s31, %s32
      %p36 = pneg %p30
      %p37 = scmp.eq.s32.totalorder %s21, 1
      %p38 = por %p36, %p37
      %p39 = scmp.ne.s32.totalorder %s31, %s34
      %p40 = scmp.eq.s32.totalorder %s21, 0
      %p41 = por %p39, %p40
      %p42 = scmp.ne.s32.totalorder %s31, %s34
      %p43 = scmp.eq.s32.totalorder %s26, 1
      %p44 = por %p42, %p43
      %p45 = scmp.ne.s32.totalorder %s34, %s35
      %p46 = scmp.eq.s32.totalorder %s26, 0
      %p47 = por %p45, %p46
      %p48 = scmp.ne.s32.totalorder %s34, %s35
      %p49 = scmp.eq.s32.totalorder %s27, 1
      %p50 = por %p48, %p49
      %p52 = scmp.ne.s32.totalorder %s35, %s51
      %p53 = scmp.eq.s32.totalorder %s27, 0
      %p54 = por %p52, %p53
      %s56 = sadd.s32 %s55, 1
      %p59 = scmp.eq.s32.totalorder %s21, 1
      %p60 = scmp.ne.s32.totalorder %s55, %s57
      %p61 = scmp.eq.s32.totalorder %s21, 0
      %p62 = por %p60, %p61
      %p63 = scmp.ne.s32.totalorder %s55, %s57
      %p64 = scmp.eq.s32.totalorder %s26, 1
      %p65 = por %p63, %p64
      %p66 = scmp.ne.s32.totalorder %s57, %s58
      %p67 = scmp.eq.s32.totalorder %s26, 0
      %p68 = por %p66, %p67
      %p69 = scmp.ne.s32.totalorder %s57, %s58
      %p70 = scmp.eq.s32.totalorder %s27, 1
      %p71 = por %p69, %p70
      %p73 = scmp.ne.s32.totalorder %s58, %s72
      %p74 = scmp.eq.s32.totalorder %s27, 0
      %p75 = por %p73, %p74
      %s77 = sadd.s32 %s76, 1
      %p80 = scmp.eq.s32.totalorder %s21, 1
      %p81 = scmp.ne.s32.totalorder %s76, %s78
      %p82 = scmp.eq.s32.totalorder %s21, 0
      %p83 = por %p81, %p82
      %p84 = scmp.ne.s32.totalorder %s76, %s78
      %p85 = scmp.eq.s32.totalorder %s26, 1
      %p86 = por %p84, %p85
      %p87 = scmp.ne.s32.totalorder %s78, %s79
      %p88 = scmp.eq.s32.totalorder %s26, 0
      %p89 = por %p87, %p88
      %p90 = scmp.ne.s32.totalorder %s78, %s79
      %p91 = scmp.eq.s32.totalorder %s27, 1
      %p92 = por %p90, %p91
      %p94 = scmp.ne.s32.totalorder %s79, %s93
      %p95 = scmp.eq.s32.totalorder %s27, 0
      %p96 = por %p94, %p95
      %s98 = sadd.s32 %s97, 1
      %p101 = scmp.eq.s32.totalorder %s21, 1
      %p102 = scmp.ne.s32.totalorder %s97, %s99
      %p103 = scmp.eq.s32.totalorder %s21, 0
      %p104 = por %p102, %p103
      %p105 = scmp.ne.s32.totalorder %s97, %s99
      %p106 = scmp.eq.s32.totalorder %s26, 1
      %p107 = por %p105, %p106
      %p108 = scmp.ne.s32.totalorder %s99, %s100
      %p109 = scmp.eq.s32.totalorder %s26, 0
      %p110 = por %p108, %p109
      %p111 = scmp.ne.s32.totalorder %s99, %s100
      %p112 = scmp.eq.s32.totalorder %s27, 1
      %p113 = por %p111, %p112
      %p115 = scmp.ne.s32.totalorder %s100, %s114
      %p116 = scmp.eq.s32.totalorder %s27, 0
      %p117 = por %p115, %p116
      %s119 = sadd.s32 %s118, 1
      %p122 = scmp.eq.s32.totalorder %s21, 1
      %p123 = scmp.ne.s32.totalorder %s118, %s120
      %p124 = scmp.eq.s32.totalorder %s21, 0
      %p125 = por %p123, %p124
      %p126 = scmp.ne.s32.totalorder %s118, %s120
      %p127 = scmp.eq.s32.totalorder %s26, 1
      %p128 = por %p126, %p127
      %p129 = scmp.ne.s32.totalorder %s120, %s121
      %p130 = scmp.eq.s32.totalorder %s26, 0
      %p131 = por %p129, %p130
      %p132 = scmp.ne.s32.totalorder %s120, %s121
      %p133 = scmp.eq.s32.totalorder %s27, 1
      %p134 = por %p132, %p133
      %p136 = scmp.ne.s32.totalorder %s121, %s135
      %p137 = scmp.eq.s32.totalorder %s27, 0
      %p138 = por %p136, %p137
      %s140 = sadd.s32 %s139, 1
      %p143 = scmp.eq.s32.totalorder %s21, 1
      %p144 = scmp.ne.s32.totalorder %s139, %s141
      %p145 = scmp.eq.s32.totalorder %s21, 0
      %p146 = por %p144, %p145
      %p147 = scmp.ne.s32.totalorder %s139, %s141
      %p148 = scmp.eq.s32.totalorder %s26, 1
      %p149 = por %p147, %p148
      %p150 = scmp.ne.s32.totalorder %s141, %s142
      %p151 = scmp.eq.s32.totalorder %s26, 0
      %p152 = por %p150, %p151
      %p153 = scmp.ne.s32.totalorder %s141, %s142
      %p154 = scmp.eq.s32.totalorder %s27, 1
      %p155 = por %p153, %p154
      %p157 = scmp.ne.s32.totalorder %s142, %s156
      %p158 = scmp.eq.s32.totalorder %s27, 0
      %p159 = por %p157, %p158
      %s161 = sadd.s32 %s160, 1
      %p164 = scmp.eq.s32.totalorder %s21, 1
      %p165 = scmp.ne.s32.totalorder %s160, %s162
      %p166 = scmp.eq.s32.totalorder %s21, 0
      %p167 = por %p165, %p166
      %p168 = scmp.ne.s32.totalorder %s160, %s162
      %p169 = scmp.eq.s32.totalorder %s26, 1
      %p170 = por %p168, %p169
      %p171 = scmp.ne.s32.totalorder %s162, %s163
      %p172 = scmp.eq.s32.totalorder %s26, 0
      %p173 = por %p171, %p172
      %p174 = scmp.ne.s32.totalorder %s162, %s163
      %p175 = scmp.eq.s32.totalorder %s27, 1
      %p176 = por %p174, %p175
      %p178 = scmp.ne.s32.totalorder %s163, %s177
      %p179 = scmp.eq.s32.totalorder %s27, 0
      %p180 = por %p178, %p179
      %s181 = ssub.s32 %s21, %s28
      %p182 = scmp.eq.s32.totalorder %s181, 0
      %s184 = sadd.s32 %s183, 1
      %s185 = scalar_select %p182, %s183, %s184
      %p188 = pneg %p182
      %p189 = scmp.eq.s32.totalorder %s21, 1
      %p190 = por %p188, %p189
      %p191 = scmp.ne.s32.totalorder %s183, %s186
      %p192 = scmp.eq.s32.totalorder %s21, 0
      %p193 = por %p191, %p192
      %p194 = scmp.ne.s32.totalorder %s183, %s186
      %p195 = scmp.eq.s32.totalorder %s26, 1
      %p196 = por %p194, %p195
      %p197 = scmp.ne.s32.totalorder %s186, %s187
      %p198 = scmp.eq.s32.totalorder %s26, 0
      %p199 = por %p197, %p198
      %p200 = scmp.ne.s32.totalorder %s186, %s187
      %p201 = scmp.eq.s32.totalorder %s27, 1
      %p202 = por %p200, %p201
      %p204 = scmp.ne.s32.totalorder %s187, %s203
      %p205 = scmp.eq.s32.totalorder %s27, 0
      %p206 = por %p204, %p205
      %p207 = scmp.le.s32.totalorder 1, %s21
      %p208 = scmp.lt.s32.totalorder %s21, 3
      %p209 = pnand %p207, %p208
      %p210 = pneg %p209
      // Predicated region
      $region9: #{tpu_custom_call.1} parent=5 // pred_check
        _
      $region10: #{tpu_custom_call.1} parent=5 // pred_check_branch
        %212 = sbr.rel (%p209) target = $region12
      $region11: #{tpu_custom_call.1} parent=5 // pred_region
        %s213 = ssub.s32 %s21, 1
        // Predicated region
        $region13: #{tpu_custom_call.1} parent=11 // pred_check
          %p214 = pneg %p68
        $region14: #{tpu_custom_call.1} parent=11 // pred_check_branch
          %216 = sbr.rel (%p214) target = $region16
        $region15: #{tpu_custom_call.1} parent=11 // pred_region
          %218 = vsyncadd [#allocation6], 0
          %s219 = sshll.u32 %s1, 4
          %s220 = int_to_ptr.hbm [resolvable:$true] %s219
          %s221 = sshll.u32 [#allocation5], 4
          %s222 = int_to_ptr.vmem [resolvable:$true] %s221
          %227 = dma.hbm_to_vmem [thread:$0]  %s220, 3072, %s222, [#allocation6], 64, 64, 4
        $region16: #{tpu_custom_call.1} parent=11 // pred_fallthru
          _
        // Predicated region
        $region17: #{tpu_custom_call.1} parent=11 // pred_check
          %p228 = pneg %p89
        $region18: #{tpu_custom_call.1} parent=11 // pred_check_branch
          %230 = sbr.rel (%p228) target = $region20
        $region19: #{tpu_custom_call.1} parent=11 // pred_region
          _
        $region20: #{tpu_custom_call.1} parent=11 // pred_fallthru
          _
        // Predicated region
        $region21: #{tpu_custom_call.1} parent=11 // pred_check
          %p231 = pneg %p110
        $region22: #{tpu_custom_call.1} parent=11 // pred_check_branch
          %233 = sbr.rel (%p231) target = $region24
        $region23: #{tpu_custom_call.1} parent=11 // pred_region
          %235 = vsyncadd [#allocation6], 0
          %s236 = sshll.u32 %s3, 4
          %s237 = int_to_ptr.hbm [resolvable:$true] %s236
          %s238 = sshll.u32 [#allocation7], 4
          %s239 = int_to_ptr.vmem [resolvable:$true] %s238
          %244 = dma.hbm_to_vmem [thread:$0]  %s237, 1024, %s239, [#allocation6], 64, 64, 4
        $region24: #{tpu_custom_call.1} parent=11 // pred_fallthru
          _
        // Predicated region
        $region25: #{tpu_custom_call.1} parent=11 // pred_check
          %p245 = pneg %p131
        $region26: #{tpu_custom_call.1} parent=11 // pred_check_branch
          %247 = sbr.rel (%p245) target = $region28
        $region27: #{tpu_custom_call.1} parent=11 // pred_region
          _
        $region28: #{tpu_custom_call.1} parent=11 // pred_fallthru
          _
        // Predicated region
        $region29: #{tpu_custom_call.1} parent=11 // pred_check
          %p248 = pneg %p152
        $region30: #{tpu_custom_call.1} parent=11 // pred_check_branch
          %250 = sbr.rel (%p248) target = $region32
        $region31: #{tpu_custom_call.1} parent=11 // pred_region
          %252 = vsyncadd [#allocation9], 0
          %s253 = sshll.u32 %s5, 4
          %s254 = int_to_ptr.hbm [resolvable:$true] %s253
          %s255 = sshll.u32 [#allocation8], 4
          %s256 = int_to_ptr.vmem [resolvable:$true] %s255
          %261 = dma.hbm_to_vmem [thread:$0]  %s254, 1024, %s256, [#allocation9], 64, 64, 4
        $region32: #{tpu_custom_call.1} parent=11 // pred_fallthru
          _
        // Predicated region
        $region33: #{tpu_custom_call.1} parent=11 // pred_check
          %p262 = pneg %p173
        $region34: #{tpu_custom_call.1} parent=11 // pred_check_branch
          %264 = sbr.rel (%p262) target = $region36
        $region35: #{tpu_custom_call.1} parent=11 // pred_region
          _
        $region36: #{tpu_custom_call.1} parent=11 // pred_fallthru
          _
      $region12: #{tpu_custom_call.1} parent=5 // pred_fallthru
        _
      %p265 = scmp.lt.s32.totalorder %s21, 2
      // Predicated region
      $region37: #{tpu_custom_call.1} parent=5 // pred_check
        %p266 = pneg %p265
      $region38: #{tpu_custom_call.1} parent=5 // pred_check_branch
        %268 = sbr.rel (%p266) target = $region40
      $region39: #{tpu_custom_call.1} parent=5 // pred_region
        // Predicated region
        $region41: #{tpu_custom_call.1} parent=39 // pred_check
          %p269 = pneg %p41
        $region42: #{tpu_custom_call.1} parent=39 // pred_check_branch
          %271 = sbr.rel (%p269) target = $region44
        $region43: #{tpu_custom_call.1} parent=39 // pred_region
          %s272 = sand.u32 %s31, 1
          %s273 = scalar_lea.sflag [#allocation3], %s272
          %s274 = sand.u32 %s31, 1
          %s275 = smul.addr %s274, 48
          %s276 = scalar_lea.vmem [#allocation2], %s275
          %s277 = smul.u32 2, %s21
          %s278 = ssub.s32 3, %s277
          %p279 = scmp.lt.s32.totalorder %s278, 2
          %s280 = scalar_select %p279, %s278, 2
          %s281 = smul.u32 8, %s280
          %s282 = smul.u32 %s281, 3
          %s283 = ssub.s32 48, %s282
          %s284 = sshll.u32 %s283, 4
          %285 = vsyncadd %s273, %s284
          %p286 = scmp.ne.s32.totalorder 0, %s282
          %s287 = smul.addr %s277, 3
          %s288 = smul.addr %s287, 8
          %s289 = scalar_lea.hbm %s0, %s288
          %s290 = smul.u32 24, %s280
          %s291 = sshll.u32 %s289, 4
          %s292 = int_to_ptr.hbm [resolvable:$true] %s291
          %s293 = sshll.u32 %s276, 4
          %s294 = int_to_ptr.vmem [resolvable:$true] %s293
          %s295 = sshll.u32 %s290, 4
          %299 = dma.hbm_to_vmem [thread:$0]  (%p286), %s292, %s295, %s294, %s273, 384, 384, 24
        $region44: #{tpu_custom_call.1} parent=39 // pred_fallthru
          _
      $region40: #{tpu_custom_call.1} parent=5 // pred_fallthru
        _
      %p300 = scmp.le.s32.totalorder 1, %s21
      %p301 = scmp.lt.s32.totalorder %s21, 3
      %p302 = pnand %p300, %p301
      %p303 = pneg %p302
      // Predicated region
      $region45: #{tpu_custom_call.1} parent=5 // pred_check
        _
      $region46: #{tpu_custom_call.1} parent=5 // pred_check_branch
        %305 = sbr.rel (%p302) target = $region48
      $region47: #{tpu_custom_call.1} parent=5 // pred_region
        %s306 = ssub.s32 %s21, 1
        %s307 = sand.u32 %s34, 1
        %s308 = scalar_lea.sflag [#allocation3], %s307
        %s309 = sand.u32 %s34, 1
        %s310 = smul.addr %s309, 48
        %s311 = scalar_lea.vmem [#allocation2], %s310
        // Predicated region
        $region49: #{tpu_custom_call.1} parent=47 // pred_check
          %p312 = pneg %p47
        $region50: #{tpu_custom_call.1} parent=47 // pred_check_branch
          %314 = sbr.rel (%p312) target = $region52
        $region51: #{tpu_custom_call.1} parent=47 // pred_region
          %316 = dma.done %s308, 768
        $region52: #{tpu_custom_call.1} parent=47 // pred_fallthru
          _
        // Predicated region
        $region53: #{tpu_custom_call.1} parent=47 // pred_check
          %p317 = pneg %p68
        $region54: #{tpu_custom_call.1} parent=47 // pred_check_branch
          %319 = sbr.rel (%p317) target = $region56
        $region55: #{tpu_custom_call.1} parent=47 // pred_region
          %321 = dma.done [#allocation6], 3072
        $region56: #{tpu_custom_call.1} parent=47 // pred_fallthru
          _
        // Predicated region
        $region57: #{tpu_custom_call.1} parent=47 // pred_check
          %p322 = pneg %p110
        $region58: #{tpu_custom_call.1} parent=47 // pred_check_branch
          %324 = sbr.rel (%p322) target = $region60
        $region59: #{tpu_custom_call.1} parent=47 // pred_region
          %326 = dma.done [#allocation6], 1024
        $region60: #{tpu_custom_call.1} parent=47 // pred_fallthru
          _
        // Predicated region
        $region61: #{tpu_custom_call.1} parent=47 // pred_check
          %p327 = pneg %p152
        $region62: #{tpu_custom_call.1} parent=47 // pred_check_branch
          %329 = sbr.rel (%p327) target = $region64
        $region63: #{tpu_custom_call.1} parent=47 // pred_region
          %331 = dma.done [#allocation9], 1024
        $region64: #{tpu_custom_call.1} parent=47 // pred_fallthru
          _
        %s332 = sand.u32 %s34, 1
        %s333 = scalar_lea.sflag [#allocation3], %s332
        %s334 = sand.u32 %s34, 1
        %s335 = smul.addr %s334, 48
        %s336 = scalar_lea.vmem [#allocation2], %s335
        %p337 = pneg %p47
        %p338 = pneg %p44
        %p339 = pneg %p68
        %p340 = pneg %p65
        %p341 = pneg %p89
        %p342 = pneg %p86
        %p343 = pneg %p110
        %p344 = pneg %p107
        %p345 = pneg %p131
        %p346 = pneg %p128
        %p347 = pneg %p152
        %p348 = pneg %p149
        %p349 = pneg %p173
        %p350 = pneg %p170
        %p351 = pneg %p199
        %p352 = pneg %p196
        %s353 = sand.u32 %s186, 1
        %s354 = scalar_lea.sflag [#allocation4], %s353
        %s355 = sand.u32 %s186, 1
        %s356 = smul.addr %s355, 16
        %s357 = scalar_lea.vmem [#allocation10], %s356
        %s358 = smul.u32 2, %s26
        %s359 = ssub.s32 3, %s358
        %p360 = scmp.lt.s32.totalorder %s359, 2
        %s361 = scalar_select %p360, %s359, 2
        %s362 = smul.u32 8, %s361
        %s363 = smul.u32 %s362, 3
        %s364 = smul.u32 2, %s26
        %s365 = ssub.s32 3, %s364
        %p366 = scmp.lt.s32.totalorder %s365, 2
        %s367 = scalar_select %p366, %s365, 2
        %s368 = smul.u32 8, %s367
        %v369 = vld [vmem:[%s311] sm:$0xff]
        %v370 = vld [vmem:[%s311 + $0x8] sm:$0xff]
        %v371 = vld [vmem:[%s311 + $0x10] sm:$0xff]
        %v372 = vld [vmem:[%s311 + $0x18] sm:$0xff]
        %v373 = vld [vmem:[%s311 + $0x20] sm:$0xff]
        %v374 = vld [vmem:[%s311 + $0x28] sm:$0xff]
        %v375 = vpack.c.bf16 %v372, %v369
        %v376 = vpack.c.bf16 %v373, %v370
        %v377 = vpack.c.bf16 %v374, %v371
        %v378 = vld [vmem:[#allocation5] sm:$0xf]
        %v379 = vld [vmem:[#allocation5 + $0x4] sm:$0xf]
        %v380 = vld [vmem:[#allocation5 + $0x8] sm:$0xf]
        %v381 = vld [vmem:[#allocation5 + $0xc] sm:$0xf]
        %v382 = vld [vmem:[#allocation5 + $0x10] sm:$0xf]
        %v383 = vld [vmem:[#allocation5 + $0x14] sm:$0xf]
        %v384 = vld [vmem:[#allocation5 + $0x18] sm:$0xf]
        %v385 = vld [vmem:[#allocation5 + $0x1c] sm:$0xf]
        %v386 = vld [vmem:[#allocation5 + $0x20] sm:$0xf]
        %v387 = vld [vmem:[#allocation5 + $0x24] sm:$0xf]
        %v388 = vld [vmem:[#allocation5 + $0x28] sm:$0xf]
        %v389 = vld [vmem:[#allocation5 + $0x2c] sm:$0xf]
        %v390 = vld [vmem:[#allocation5 + $0x30] sm:$0xf]
        %v391 = vld [vmem:[#allocation5 + $0x34] sm:$0xf]
        %v392 = vld [vmem:[#allocation5 + $0x38] sm:$0xf]
        %v393 = vld [vmem:[#allocation5 + $0x3c] sm:$0xf]
        %v394 = vld [vmem:[#allocation5 + $0x40] sm:$0xf]
        %v395 = vld [vmem:[#allocation5 + $0x44] sm:$0xf]
        %v396 = vld [vmem:[#allocation5 + $0x48] sm:$0xf]
        %v397 = vld [vmem:[#allocation5 + $0x4c] sm:$0xf]
        %v398 = vld [vmem:[#allocation5 + $0x50] sm:$0xf]
        %v399 = vld [vmem:[#allocation5 + $0x54] sm:$0xf]
        %v400 = vld [vmem:[#allocation5 + $0x58] sm:$0xf]
        %v401 = vld [vmem:[#allocation5 + $0x5c] sm:$0xf]
        %v402 = vld [vmem:[#allocation5 + $0x60] sm:$0xf]
        %v403 = vld [vmem:[#allocation5 + $0x64] sm:$0xf]
        %v404 = vld [vmem:[#allocation5 + $0x68] sm:$0xf]
        %v405 = vld [vmem:[#allocation5 + $0x6c] sm:$0xf]
        %v406 = vld [vmem:[#allocation5 + $0x70] sm:$0xf]
        %v407 = vld [vmem:[#allocation5 + $0x74] sm:$0xf]
        %v408 = vld [vmem:[#allocation5 + $0x78] sm:$0xf]
        %v409 = vld [vmem:[#allocation5 + $0x7c] sm:$0xf]
        %v410 = vld [vmem:[#allocation5 + $0x80] sm:$0xf]
        %v411 = vld [vmem:[#allocation5 + $0x84] sm:$0xf]
        %v412 = vld [vmem:[#allocation5 + $0x88] sm:$0xf]
        %v413 = vld [vmem:[#allocation5 + $0x8c] sm:$0xf]
        %v414 = vld [vmem:[#allocation5 + $0x90] sm:$0xf]
        %v415 = vld [vmem:[#allocation5 + $0x94] sm:$0xf]
        %v416 = vld [vmem:[#allocation5 + $0x98] sm:$0xf]
        %v417 = vld [vmem:[#allocation5 + $0x9c] sm:$0xf]
        %v418 = vld [vmem:[#allocation5 + $0xa0] sm:$0xf]
        %v419 = vld [vmem:[#allocation5 + $0xa4] sm:$0xf]
        %v420 = vld [vmem:[#allocation5 + $0xa8] sm:$0xf]
        %v421 = vld [vmem:[#allocation5 + $0xac] sm:$0xf]
        %v422 = vld [vmem:[#allocation5 + $0xb0] sm:$0xf]
        %v423 = vld [vmem:[#allocation5 + $0xb4] sm:$0xf]
        %v424 = vld [vmem:[#allocation5 + $0xb8] sm:$0xf]
        %v425 = vld [vmem:[#allocation5 + $0xbc] sm:$0xf]
        %v426 = vld [vmem:[%s2] sm:$0x1]
        %v428 = vperm.slane %v426, 0
        %v478 = vunpack.c.l.b16 %v378
        %v479 = vunpack.c.l.b16 %v379
        %v480 = vunpack.c.l.b16 %v380
        %v481 = vunpack.c.l.b16 %v381
        %v482 = vunpack.c.l.b16 %v382
        %v483 = vunpack.c.l.b16 %v383
        %v484 = vunpack.c.l.b16 %v384
        %v485 = vunpack.c.l.b16 %v385
        %v486 = vunpack.c.l.b16 %v386
        %v487 = vunpack.c.l.b16 %v387
        %v488 = vunpack.c.l.b16 %v388
        %v489 = vunpack.c.l.b16 %v389
        %v490 = vunpack.c.l.b16 %v390
        %v491 = vunpack.c.l.b16 %v391
        %v492 = vunpack.c.l.b16 %v392
        %v493 = vunpack.c.l.b16 %v393
        %v494 = vunpack.c.l.b16 %v394
        %v495 = vunpack.c.l.b16 %v395
        %v496 = vunpack.c.l.b16 %v396
        %v497 = vunpack.c.l.b16 %v397
        %v498 = vunpack.c.l.b16 %v398
        %v499 = vunpack.c.l.b16 %v399
        %v500 = vunpack.c.l.b16 %v400
        %v501 = vunpack.c.l.b16 %v401
        %v502 = vunpack.c.l.b16 %v402
        %v503 = vunpack.c.l.b16 %v403
        %v504 = vunpack.c.l.b16 %v404
        %v505 = vunpack.c.l.b16 %v405
        %v506 = vunpack.c.l.b16 %v406
        %v507 = vunpack.c.l.b16 %v407
        %v508 = vunpack.c.l.b16 %v408
        %v509 = vunpack.c.l.b16 %v409
        %v510 = vunpack.c.l.b16 %v410
        %v511 = vunpack.c.l.b16 %v411
        %v512 = vunpack.c.l.b16 %v412
        %v513 = vunpack.c.l.b16 %v413
        %v514 = vunpack.c.l.b16 %v414
        %v515 = vunpack.c.l.b16 %v415
        %v516 = vunpack.c.l.b16 %v416
        %v517 = vunpack.c.l.b16 %v417
        %v518 = vunpack.c.l.b16 %v418
        %v519 = vunpack.c.l.b16 %v419
        %v520 = vunpack.c.l.b16 %v420
        %v521 = vunpack.c.l.b16 %v421
        %v522 = vunpack.c.l.b16 %v422
        %v523 = vunpack.c.l.b16 %v423
        %v524 = vunpack.c.l.b16 %v424
        %v525 = vunpack.c.l.b16 %v425
        %v526 = vpack.c.b16 %v479, %v478
        %v527 = vpack.c.b16 %v481, %v480
        %v528 = vpack.c.b16 %v483, %v482
        %v529 = vpack.c.b16 %v485, %v484
        %v530 = vpack.c.b16 %v487, %v486
        %v531 = vpack.c.b16 %v489, %v488
        %v532 = vpack.c.b16 %v491, %v490
        %v533 = vpack.c.b16 %v493, %v492
        %v534 = vpack.c.b16 %v495, %v494
        %v535 = vpack.c.b16 %v497, %v496
        %v536 = vpack.c.b16 %v499, %v498
        %v537 = vpack.c.b16 %v501, %v500
        %v538 = vpack.c.b16 %v503, %v502
        %v539 = vpack.c.b16 %v505, %v504
        %v540 = vpack.c.b16 %v507, %v506
        %v541 = vpack.c.b16 %v509, %v508
        %v542 = vpack.c.b16 %v511, %v510
        %v543 = vpack.c.b16 %v513, %v512
        %v544 = vpack.c.b16 %v515, %v514
        %v545 = vpack.c.b16 %v517, %v516
        %v546 = vpack.c.b16 %v519, %v518
        %v547 = vpack.c.b16 %v521, %v520
        %v548 = vpack.c.b16 %v523, %v522
        %v549 = vpack.c.b16 %v525, %v524
        %574 = vmatpush.bf16.msra.mxu0 %v533
        %575 = vmatpush.bf16.msra.mxu0 %v532
        %576 = vmatpush.bf16.msra.mxu0 %v531
        %577 = vmatpush.bf16.msra.mxu0 %v530
        %578 = vmatpush.bf16.msra.mxu0 %v529
        %579 = vmatpush.bf16.msra.mxu0 %v528
        %580 = vmatpush.bf16.msra.mxu0 %v527
        %581 = vmatpush.bf16.msra.mxu0 %v526
        %582 = vmatmul.bf16.gmra.mxu0 %v375
        %v583 = vpop.f32.mrf.mxu0
        %v584 = vadd.f32 %v428, %v583
        %v585 = vpop.f32.mrf.mxu0
        %v586 = vadd.f32 %v428, %v585
        %587 = vdwg.mxu0
        %588 = vmatpush.bf16.msra.mxu0 %v541
        %589 = vmatpush.bf16.msra.mxu0 %v540
        %590 = vmatpush.bf16.msra.mxu0 %v539
        %591 = vmatpush.bf16.msra.mxu0 %v538
        %592 = vmatpush.bf16.msra.mxu0 %v537
        %593 = vmatpush.bf16.msra.mxu0 %v536
        %594 = vmatpush.bf16.msra.mxu0 %v535
        %595 = vmatpush.bf16.msra.mxu0 %v534
        %596 = vmatmul.bf16.gmra.mxu0 %v376
        %v597 = vpop.f32.mrf.mxu0
        %v598 = vadd.f32 %v584, %v597
        %v599 = vpop.f32.mrf.mxu0
        %v600 = vadd.f32 %v586, %v599
        %601 = vdwg.mxu0
        %602 = vmatpush.bf16.msra.mxu0 %v549
        %603 = vmatpush.bf16.msra.mxu0 %v548
        %604 = vmatpush.bf16.msra.mxu0 %v547
        %605 = vmatpush.bf16.msra.mxu0 %v546
        %606 = vmatpush.bf16.msra.mxu0 %v545
        %607 = vmatpush.bf16.msra.mxu0 %v544
        %608 = vmatpush.bf16.msra.mxu0 %v543
        %609 = vmatpush.bf16.msra.mxu0 %v542
        %610 = vmatmul.bf16.gmra.mxu0 %v377
        %v611 = vpop.f32.mrf.mxu0
        %v612 = vadd.f32 %v598, %v611
        %v613 = vpop.f32.mrf.mxu0
        %v614 = vadd.f32 %v600, %v613
        %615 = vdwg.mxu0
        %v616 = vmax.f32 %v612, 0.0
        %v617 = vmax.f32 %v614, 0.0
        %v618 = vpack.c.bf16 %v617, %v616
        %v619 = vld [vmem:[#allocation7] sm:$0xf]
        %v620 = vld [vmem:[#allocation7 + $0x4] sm:$0xf]
        %v621 = vld [vmem:[#allocation7 + $0x8] sm:$0xf]
        %v622 = vld [vmem:[#allocation7 + $0xc] sm:$0xf]
        %v623 = vld [vmem:[#allocation7 + $0x10] sm:$0xf]
        %v624 = vld [vmem:[#allocation7 + $0x14] sm:$0xf]
        %v625 = vld [vmem:[#allocation7 + $0x18] sm:$0xf]
        %v626 = vld [vmem:[#allocation7 + $0x1c] sm:$0xf]
        %v627 = vld [vmem:[#allocation7 + $0x20] sm:$0xf]
        %v628 = vld [vmem:[#allocation7 + $0x24] sm:$0xf]
        %v629 = vld [vmem:[#allocation7 + $0x28] sm:$0xf]
        %v630 = vld [vmem:[#allocation7 + $0x2c] sm:$0xf]
        %v631 = vld [vmem:[#allocation7 + $0x30] sm:$0xf]
        %v632 = vld [vmem:[#allocation7 + $0x34] sm:$0xf]
        %v633 = vld [vmem:[#allocation7 + $0x38] sm:$0xf]
        %v634 = vld [vmem:[#allocation7 + $0x3c] sm:$0xf]
        %v635 = vld [vmem:[%s4] sm:$0x1]
        %v637 = vperm.slane %v635, 0
        %v655 = vunpack.c.l.b16 %v619
        %v656 = vunpack.c.l.b16 %v620
        %v657 = vunpack.c.l.b16 %v621
        %v658 = vunpack.c.l.b16 %v622
        %v659 = vunpack.c.l.b16 %v623
        %v660 = vunpack.c.l.b16 %v624
        %v661 = vunpack.c.l.b16 %v625
        %v662 = vunpack.c.l.b16 %v626
        %v663 = vunpack.c.l.b16 %v627
        %v664 = vunpack.c.l.b16 %v628
        %v665 = vunpack.c.l.b16 %v629
        %v666 = vunpack.c.l.b16 %v630
        %v667 = vunpack.c.l.b16 %v631
        %v668 = vunpack.c.l.b16 %v632
        %v669 = vunpack.c.l.b16 %v633
        %v670 = vunpack.c.l.b16 %v634
        %v671 = vpack.c.b16 %v656, %v655
        %v672 = vpack.c.b16 %v658, %v657
        %v673 = vpack.c.b16 %v660, %v659
        %v674 = vpack.c.b16 %v662, %v661
        %v675 = vpack.c.b16 %v664, %v663
        %v676 = vpack.c.b16 %v666, %v665
        %v677 = vpack.c.b16 %v668, %v667
        %v678 = vpack.c.b16 %v670, %v669
        %687 = vmatpush.bf16.msra.mxu0 %v678
        %688 = vmatpush.bf16.msra.mxu0 %v677
        %689 = vmatpush.bf16.msra.mxu0 %v676
        %690 = vmatpush.bf16.msra.mxu0 %v675
        %691 = vmatpush.bf16.msra.mxu0 %v674
        %692 = vmatpush.bf16.msra.mxu0 %v673
        %693 = vmatpush.bf16.msra.mxu0 %v672
        %694 = vmatpush.bf16.msra.mxu0 %v671
        %695 = vmatmul.bf16.gmra.mxu0 %v618
        %v696 = vpop.f32.mrf.mxu0
        %v697 = vadd.f32 %v637, %v696
        %v698 = vpop.f32.mrf.mxu0
        %v699 = vadd.f32 %v637, %v698
        %700 = vdwg.mxu0
        %v701 = vmax.f32 %v697, 0.0
        %v702 = vmax.f32 %v699, 0.0
        %v703 = vpack.c.bf16 %v702, %v701
        %v704 = vld [vmem:[#allocation8] sm:$0xf]
        %v705 = vld [vmem:[#allocation8 + $0x4] sm:$0xf]
        %v706 = vld [vmem:[#allocation8 + $0x8] sm:$0xf]
        %v707 = vld [vmem:[#allocation8 + $0xc] sm:$0xf]
        %v708 = vld [vmem:[#allocation8 + $0x10] sm:$0xf]
        %v709 = vld [vmem:[#allocation8 + $0x14] sm:$0xf]
        %v710 = vld [vmem:[#allocation8 + $0x18] sm:$0xf]
        %v711 = vld [vmem:[#allocation8 + $0x1c] sm:$0xf]
        %v712 = vld [vmem:[#allocation8 + $0x20] sm:$0xf]
        %v713 = vld [vmem:[#allocation8 + $0x24] sm:$0xf]
        %v714 = vld [vmem:[#allocation8 + $0x28] sm:$0xf]
        %v715 = vld [vmem:[#allocation8 + $0x2c] sm:$0xf]
        %v716 = vld [vmem:[#allocation8 + $0x30] sm:$0xf]
        %v717 = vld [vmem:[#allocation8 + $0x34] sm:$0xf]
        %v718 = vld [vmem:[#allocation8 + $0x38] sm:$0xf]
        %v719 = vld [vmem:[#allocation8 + $0x3c] sm:$0xf]
        %v720 = vld [vmem:[%s6] sm:$0x1]
        %v722 = vperm.slane %v720, 0
        %v740 = vunpack.c.l.b16 %v704
        %v741 = vunpack.c.l.b16 %v705
        %v742 = vunpack.c.l.b16 %v706
        %v743 = vunpack.c.l.b16 %v707
        %v744 = vunpack.c.l.b16 %v708
        %v745 = vunpack.c.l.b16 %v709
        %v746 = vunpack.c.l.b16 %v710
        %v747 = vunpack.c.l.b16 %v711
        %v748 = vunpack.c.l.b16 %v712
        %v749 = vunpack.c.l.b16 %v713
        %v750 = vunpack.c.l.b16 %v714
        %v751 = vunpack.c.l.b16 %v715
        %v752 = vunpack.c.l.b16 %v716
        %v753 = vunpack.c.l.b16 %v717
        %v754 = vunpack.c.l.b16 %v718
        %v755 = vunpack.c.l.b16 %v719
        %v756 = vpack.c.b16 %v741, %v740
        %v757 = vpack.c.b16 %v743, %v742
        %v758 = vpack.c.b16 %v745, %v744
        %v759 = vpack.c.b16 %v747, %v746
        %v760 = vpack.c.b16 %v749, %v748
        %v761 = vpack.c.b16 %v751, %v750
        %v762 = vpack.c.b16 %v753, %v752
        %v763 = vpack.c.b16 %v755, %v754
        %772 = vmatpush.bf16.msra.mxu0 %v763
        %773 = vmatpush.bf16.msra.mxu0 %v762
        %774 = vmatpush.bf16.msra.mxu0 %v761
        %775 = vmatpush.bf16.msra.mxu0 %v760
        %776 = vmatpush.bf16.msra.mxu0 %v759
        %777 = vmatpush.bf16.msra.mxu0 %v758
        %778 = vmatpush.bf16.msra.mxu0 %v757
        %779 = vmatpush.bf16.msra.mxu0 %v756
        %780 = vmatmul.bf16.gmra.mxu0 %v703
        %v781 = vpop.f32.mrf.mxu0
        %v782 = vadd.f32 %v722, %v781
        %v783 = vpop.f32.mrf.mxu0
        %v784 = vadd.f32 %v722, %v783
        %785 = vdwg.mxu0
        %786 = vmax.xlane.f32.xlu0 %v782
        %v787 = vpop.xlane.xlu0 %786
        %788 = vmax.xlane.f32.xlu0 %v784
        %v789 = vpop.xlane.xlu0 %788
        %v790 = vsub.f32 %v782, %v787
        %v791 = vsub.f32 %v784, %v789
        %v792 = vmul.f32 %v790, 1.442695
        %v793 = vpow.pop %v792
        %v794 = vmul.f32 %v791, 1.442695
        %v795 = vpow.pop %v794
        %796 = vadd.xlane.f32.xlu0 %v793
        %v797 = vpop.xlane.xlu0 %796
        %798 = vadd.xlane.f32.xlu0 %v795
        %v799 = vpop.xlane.xlu0 %798
        %v800 = vrcp.pop %v797
        %v801 = vmul.f32 %v797, %v800
        %v802 = vsub.f32 1.0, %v801
        %v803 = vmul.f32 %v800, %v802
        %v804 = vadd.f32 %v800, %v803
        %vm805 = vweird.f32 %v797
        %vm806 = vweird.f32 %v800
        %vm807 = vmor %vm805, %vm806
        %v808 = vsel %vm807, %v800, %v804
        %v809 = vand.u32 2147483647, %v797
        %vm810 = vcmp.eq.f32.partialorder %v809, 8.507059e+37
        %v811 = vand.u32 %v797, 2147483648
        %v812 = vor.u32 1.1754944e-38, %v811
        %v813 = vsel %vm810, %v812, %v808
        %v814 = vmul.f32 %v793, %v813
        %v815 = vrcp.pop %v799
        %v816 = vmul.f32 %v799, %v815
        %v817 = vsub.f32 1.0, %v816
        %v818 = vmul.f32 %v815, %v817
        %v819 = vadd.f32 %v815, %v818
        %vm820 = vweird.f32 %v799
        %vm821 = vweird.f32 %v815
        %vm822 = vmor %vm820, %vm821
        %v823 = vsel %vm822, %v815, %v819
        %v824 = vand.u32 2147483647, %v799
        %vm825 = vcmp.eq.f32.partialorder %v824, 8.507059e+37
        %v826 = vand.u32 %v799, 2147483648
        %v827 = vor.u32 1.1754944e-38, %v826
        %v828 = vsel %vm825, %v827, %v823
        %v829 = vmul.f32 %v795, %v828
        %830 = vst [vmem:[%s357] sm:$0xff] %v814
        %831 = vst [vmem:[%s357 + $0x8] sm:$0xff] %v829
        %s832 = sand.u32 %s186, 1
        %s833 = scalar_lea.sflag [#allocation4], %s832
        %s834 = sand.u32 %s186, 1
        %s835 = smul.addr %s834, 16
        %s836 = scalar_lea.vmem [#allocation10], %s835
        // Predicated region
        $region65: #{tpu_custom_call.1} parent=47 // pred_check
          %p837 = pneg %p196
        $region66: #{tpu_custom_call.1} parent=47 // pred_check_branch
          %839 = sbr.rel (%p837) target = $region68
        $region67: #{tpu_custom_call.1} parent=47 // pred_region
          %s840 = smul.u32 2, %s26
          %s841 = ssub.s32 3, %s840
          %p842 = scmp.lt.s32.totalorder %s841, 2
          %s843 = scalar_select %p842, %s841, 2
          %s844 = smul.u32 8, %s843
          %s845 = ssub.s32 16, %s844
          %s846 = sshll.u32 %s845, 4
          %847 = vsyncadd %s833, %s846
          %p848 = scmp.ne.s32.totalorder 0, %s844
          %s849 = smul.addr %s840, 8
          %s850 = scalar_lea.hbm %s7, %s849
          %s851 = smul.u32 8, %s843
          %s852 = sshll.u32 %s836, 4
          %s853 = int_to_ptr.vmem [resolvable:$true] %s852
          %s854 = sshll.u32 %s850, 4
          %s855 = int_to_ptr.hbm [resolvable:$true] %s854
          %s856 = sshll.u32 %s851, 4
          %860 = dma.vmem_to_hbm [thread:$0]  (%p848), %s853, %s856, %s855, %s833, 128, 128, 8
        $region68: #{tpu_custom_call.1} parent=47 // pred_fallthru
          _
      $region48: #{tpu_custom_call.1} parent=5 // pred_fallthru
        _
      %p861 = scmp.le.s32.totalorder 2, %s21
      // Predicated region
      $region69: #{tpu_custom_call.1} parent=5 // pred_check
        %p862 = pneg %p861
      $region70: #{tpu_custom_call.1} parent=5 // pred_check_branch
        %864 = sbr.rel (%p862) target = $region72
      $region71: #{tpu_custom_call.1} parent=5 // pred_region
        %s865 = ssub.s32 %s21, 2
        // Predicated region
        $region73: #{tpu_custom_call.1} parent=71 // pred_check
          %p866 = pneg %p202
        $region74: #{tpu_custom_call.1} parent=71 // pred_check_branch
          %868 = sbr.rel (%p866) target = $region76
        $region75: #{tpu_custom_call.1} parent=71 // pred_region
          %s869 = sand.u32 %s187, 1
          %s870 = scalar_lea.sflag [#allocation4], %s869
          %s871 = sand.u32 %s187, 1
          %s872 = smul.addr %s871, 16
          %s873 = scalar_lea.vmem [#allocation10], %s872
          %875 = dma.done %s870, 256
        $region76: #{tpu_custom_call.1} parent=71 // pred_fallthru
          _
      $region72: #{tpu_custom_call.1} parent=5 // pred_fallthru
        _
    $region6: #{tpu_custom_call.1} parent=1 // loop_footer
      %s25 = sadd.s32 1, %s21
    $region7: #{tpu_custom_call.1} parent=1 // loop_footer_branch
      %20 = sbr.rel target = $region3
    $region8: #{tpu_custom_call.1} parent=1 // loop_exit
      _
    %876 = vsyncpa [#allocation3], 1
    %s877 = scalar_lea.sflag [#allocation3], 1
    %878 = vsyncpa %s877, 1
    %879 = vsyncpa [#allocation6], 1
    %880 = vsyncpa [#allocation9], 1
    %881 = vsyncpa [#allocation4], 1
    %s882 = scalar_lea.sflag [#allocation4], 1
    %883 = vsyncpa %s882, 1

</llo_original>
